<compile_context>
chip_gen: v6e
topology: v6e:2x2x1
jax: 0.10.0
libtpu: 0.0.40
codegen_flags: <defaults>
</compile_context>

<pallas_src>
import functools

import jax
import jax.numpy as jnp
from jax.experimental import pallas as pl
from jax.experimental.pallas import tpu as pltpu


def _combined_loss_kernel(preds_ref, tgt_ref,
                          ce_ref, inter_ref, psum_ref, cnt_ref,
                          *, n_classes, tile_s, real_s,
                          steps_per_chunk, needs_mask, approx_recip):
    """Grid = (batch, spatial_chunk, spatial_steps); reduction axis last.

    preds_ref : (1, C, TILE_S)     logits (bf16 or f32), lane-dense on S
    tgt_ref   : (1, 1, TILE_S) i32 class indices
    ce_ref    : (1, 1, 1, 1)   f32 per-(n,chunk) CE partial sum       (resident)
    inter_ref : (1, 1, C, 1)   f32 per-(n,chunk,c) sum of p*onehot    (resident)
    psum_ref  : (1, 1, C, 1)   f32 per-(n,chunk,c) sum of p           (resident)
    cnt_ref   : (1, 1, C, 1)   f32 per-(n,chunk,c) sum of onehot      (resident)
    """
    s = pl.program_id(2)

    @pl.when(s == 0)
    def _init():
        ce_ref[0, 0] = jnp.zeros((1, 1), jnp.float32)
        inter_ref[0, 0] = jnp.zeros((n_classes, 1), jnp.float32)
        psum_ref[0, 0] = jnp.zeros((n_classes, 1), jnp.float32)
        cnt_ref[0, 0] = jnp.zeros((n_classes, 1), jnp.float32)

    x = preds_ref[0].astype(jnp.float32)          # (C, TILE_S), f32 math
    tgt = tgt_ref[0]                              # (1, TILE_S) int32

    if needs_mask:
        chunk = pl.program_id(1)
        base = (chunk * steps_per_chunk + s) * tile_s
        lane = jax.lax.broadcasted_iota(jnp.int32, (1, tile_s), 1) + base
        valid = lane < real_s                     # (1, TILE_S) bool
        valid_f = valid.astype(jnp.float32)
        x = jnp.where(valid, x, 0.0)              # keep padding lanes finite
        tgt = jnp.where(valid, tgt, -1)           # no class matches padding

    # One-hot built in-register (no HBM one-hot stream).
    cls = jax.lax.broadcasted_iota(jnp.int32, (n_classes, tile_s), 0)
    mask = (cls == tgt).astype(jnp.float32)       # (C, TILE_S)

    # Numerically stable softmax over the class (sublane) axis — single exp.
    m = jnp.max(x, axis=0, keepdims=True)         # (1, TILE_S)
    exps = jnp.exp(x - m)
    sumexp = jnp.sum(exps, axis=0, keepdims=True)
    lse = m + jnp.log(sumexp)                     # full logsumexp(x)
    if approx_recip:
        inv = pl.reciprocal(sumexp, approx=True)  # EUP slot, VALU stays free
    else:
        inv = 1.0 / sumexp
    if needs_mask:
        inv = inv * valid_f                       # zero p on padding lanes (cheap)
    p = exps * inv                                # (C, TILE_S)

    # Cross-entropy per pixel: logsumexp(x) - x[target].
    ce_pix = lse - jnp.sum(mask * x, axis=0, keepdims=True)   # (1, TILE_S)
    if needs_mask:
        ce_pix = ce_pix * valid_f

    # Per-step lane reductions straight into the resident output blocks — no
    # large VMEM accumulators, no per-element accumulator load/store traffic.
    ce_ref[0, 0] += jnp.sum(ce_pix, axis=1, keepdims=True)        # (1, 1)
    inter_ref[0, 0] += jnp.sum(p * mask, axis=1, keepdims=True)   # (C, 1)
    psum_ref[0, 0] += jnp.sum(p, axis=1, keepdims=True)           # (C, 1)
    cnt_ref[0, 0] += jnp.sum(mask, axis=1, keepdims=True)         # (C, 1)


def _vmem_limit_bytes():
    """Explicit, generation-aware scoped-VMEM limit (v5e default 16 MiB is too
    small; v7x physical is only 64 MiB)."""
    try:
        phys = getattr(pltpu.get_tpu_info(), "vmem_capacity_bytes",
                       64 * 1024 * 1024)
    except Exception:  # no TPU info available — be conservative
        phys = 64 * 1024 * 1024
    return int(min(phys * 3 // 4, 64 * 1024 * 1024))


def _pick_tile_s(S, C, in_itemsize, vmem_budget):
    """Largest lane-aligned spatial tile that (a) gives a ~0.5 MiB logits block
    per step and (b) keeps the estimated VMEM footprint under budget."""
    s_ceil = -(-S // 128) * 128                       # lane-aligned cover of S
    # ~0.5 MiB of logits per step >> 0.35 us fixed per-step overhead.
    target = max(8 * 1024, (512 * 1024) // max(1, C * in_itemsize))
    # Footprint per spatial lane: double-buffered inputs + ~5 f32 temporaries
    # (x, exps, p, mask, slack) at sublane-padded C.
    c8 = -(-C // 8) * 8
    per_lane = 2 * (C * in_itemsize + 4) + 5 * c8 * 4
    fit = max(128, vmem_budget // per_lane)
    tile = min(target, fit, s_ceil)
    return max(128, (tile // 128) * 128)


def combined_loss(preds_nchw, targets_nhw, *, alpha=0.5, smooth=1e-5,
                  input_dtype=jnp.bfloat16, approx_recip=True,
                  tile_s=None, n_chunks=None):
    """preds_nchw: (N, C, H, W) float logits; targets_nhw: (N, H, W) int."""
    N, C, H, W = preds_nchw.shape
    S = H * W

    vmem_limit = _vmem_limit_bytes()
    itemsize = jnp.dtype(input_dtype).itemsize
    if tile_s is None:
        tile_s = _pick_tile_s(S, C, itemsize, vmem_budget=vmem_limit // 2)
    assert tile_s % 128 == 0, f"tile_s={tile_s} must be a multiple of 128"

    total_steps = -(-S // tile_s)
    if n_chunks is None:
        # Give both v7x TensorCores work when the batch alone is unbalanced.
        n_chunks = 1 if (N % 2 == 0) else 2
    n_chunks = max(1, min(n_chunks, total_steps))
    steps_per_chunk = -(-total_steps // n_chunks)
    needs_mask = (n_chunks * steps_per_chunk * tile_s != S)
    last_block = total_steps - 1

    # No transpose: keep NCHW, flatten spatial onto lanes. bf16 DMA halves HBM
    # bytes on the dominant stream; math stays f32 after the in-kernel upcast.
    preds = preds_nchw.reshape(N, C, S).astype(input_dtype)
    tgts = targets_nhw.reshape(N, 1, S).astype(jnp.int32)
    # TODO(synk): DMA targets as int8 (C <= 127) and widen in-register to cut the
    # label stream 4x; kept int32 here to stay on the proven lowering path.
    # TODO(synk): for C < 8 on VALU-bound configs (v7x / bf16), pack ceil(8/C)
    # pixels per sublane group to recover the padded-sublane throughput.

    kernel = functools.partial(
        _combined_loss_kernel,
        n_classes=C, tile_s=tile_s, real_s=S,
        steps_per_chunk=steps_per_chunk,
        needs_mask=needs_mask, approx_recip=approx_recip,
    )

    def in_index(n, c, s):
        # Clamp so a fully-out-of-range slot (uneven chunking) re-reads the last
        # partial block; its contribution is zeroed by the validity mask.
        return (n, 0, jnp.minimum(c * steps_per_chunk + s, last_block))

    def out_index(n, c, s):
        return (n, c, 0, 0)

    cost = pl.CostEstimate(
        flops=12 * N * C * S,
        transcendentals=N * C * S + 2 * N * S,
        bytes_accessed=N * C * S * itemsize + N * S * 4
                       + 4 * N * n_chunks * (3 * C + 1),
    )

    ce_p, inter_p, psum_p, cnt_p = pl.pallas_call(
        kernel,
        out_shape=(
            jax.ShapeDtypeStruct((N, n_chunks, 1, 1), jnp.float32),  # CE sum
            jax.ShapeDtypeStruct((N, n_chunks, C, 1), jnp.float32),  # sum p*1hot
            jax.ShapeDtypeStruct((N, n_chunks, C, 1), jnp.float32),  # sum p
            jax.ShapeDtypeStruct((N, n_chunks, C, 1), jnp.float32),  # sum 1hot
        ),
        grid_spec=pltpu.PrefetchScalarGridSpec(
            num_scalar_prefetch=0,
            grid=(N, n_chunks, steps_per_chunk),
            in_specs=[
                pl.BlockSpec((1, C, tile_s), in_index),
                pl.BlockSpec((1, 1, tile_s), in_index),
            ],
            out_specs=[
                pl.BlockSpec((1, 1, 1, 1), out_index),
                pl.BlockSpec((1, 1, C, 1), out_index),
                pl.BlockSpec((1, 1, C, 1), out_index),
                pl.BlockSpec((1, 1, C, 1), out_index),
            ],
        ),
        compiler_params=pltpu.CompilerParams(
            dimension_semantics=("parallel", "parallel", "arbitrary"),
            vmem_limit_bytes=vmem_limit),
        cost_estimate=cost,
    )(preds, tgts)

    # Tiny combine outside the kernel.
    ce_loss = jnp.sum(ce_p) / jnp.float32(N * S)
    inter = jnp.sum(inter_p, axis=(1, 3))                       # (N, C)
    union = jnp.sum(psum_p, axis=(1, 3)) + jnp.sum(cnt_p, axis=(1, 3))
    dice = (2.0 * inter + smooth) / (union + smooth)
    dice_loss = 1.0 - jnp.mean(dice)
    return alpha * ce_loss + (1.0 - alpha) * dice_loss


def _reference_combined_loss(preds_nchw, targets_nhw, alpha=0.5, smooth=1e-5):
    """Pure-JAX reference mirroring the PyTorch module."""
    N, C, H, W = preds_nchw.shape
    logp = jax.nn.log_softmax(preds_nchw, axis=1)
    onehot = jax.nn.one_hot(targets_nhw, C, dtype=jnp.float32)   # N,H,W,C
    onehot = jnp.transpose(onehot, (0, 3, 1, 2))                 # N,C,H,W
    ce = -jnp.mean(jnp.sum(onehot * logp, axis=1))
    p = jax.nn.softmax(preds_nchw, axis=1)
    inter = jnp.sum(p * onehot, axis=(2, 3))
    union = jnp.sum(p, axis=(2, 3)) + jnp.sum(onehot, axis=(2, 3))
    dice = (2.0 * inter + smooth) / (union + smooth)
    dice_loss = 1.0 - jnp.mean(dice)
    return alpha * ce + (1 - alpha) * dice_loss


if __name__ == "__main__":
    key = jax.random.PRNGKey(0)
    k1, k2, k3, k4 = jax.random.split(key, 4)

    # Case 1: strict path (f32 DMA, exact reciprocal), aligned shapes, tile_s=128
    # forces the multi-step init/accumulate path.  Exact comparison.
    N, C, H, W = 2, 4, 16, 16
    preds = jax.random.normal(k1, (N, C, H, W), dtype=jnp.float32)
    targets = jax.random.randint(k2, (N, H, W), 0, C, dtype=jnp.int32)
    loss = combined_loss(preds, targets, alpha=0.5, smooth=1e-5,
                         input_dtype=jnp.float32, approx_recip=False,
                         tile_s=128)
    loss = jax.block_until_ready(loss)
    ref = _reference_combined_loss(preds, targets, 0.5, 1e-5)
    assert jnp.allclose(loss, ref, rtol=1e-5, atol=1e-5), (loss, ref)

    # Case 2: default fast path (bf16 DMA + approx reciprocal) on a ragged
    # spatial size with explicit 2-way chunking — exercises the lane-validity
    # mask and the megacore chunk axis.  Reference uses the same bf16-rounded
    # logits; tolerance absorbs the approximate-reciprocal / summation drift.
    N2, C2, H2, W2 = 1, 5, 12, 20
    preds2 = jax.random.normal(k3, (N2, C2, H2, W2), dtype=jnp.float32)
    targets2 = jax.random.randint(k4, (N2, H2, W2), 0, C2, dtype=jnp.int32)
    loss2 = combined_loss(preds2, targets2, alpha=0.5, smooth=1e-5,
                          tile_s=128, n_chunks=2)
    loss2 = jax.block_until_ready(loss2)
    ref2 = _reference_combined_loss(
        preds2.astype(jnp.bfloat16).astype(jnp.float32), targets2, 0.5, 1e-5)
    assert jnp.allclose(loss2, ref2, rtol=0.0, atol=5e-3), (loss2, ref2)

    print("KERNEL_OK")
</pallas_src>

<mosaic_0001>
module attributes {stable_mosaic.version = 11 : i64} {
  func.func @_combined_loss_kernel(%arg0: i32, %arg1: i32, %arg2: i32, %arg3: memref<1x4x128xf32, #tpu.memory_space<vmem>>, %arg4: memref<1x1x128xi32, #tpu.memory_space<vmem>>, %arg5: memref<1x1x1x1xf32, #tpu.memory_space<vmem>>, %arg6: memref<1x1x4x1xf32, #tpu.memory_space<vmem>>, %arg7: memref<1x1x4x1xf32, #tpu.memory_space<vmem>>, %arg8: memref<1x1x4x1xf32, #tpu.memory_space<vmem>>) attributes {dimension_semantics = [#tpu.dimension_semantics<parallel>, #tpu.dimension_semantics<parallel>, #tpu.dimension_semantics<arbitrary>], iteration_bounds = array<i64: 2, 1, 2>, scalar_prefetch = 0 : i64, scratch_operands = 0 : i64, tpu.core_type = #tpu.core_type<tc>, window_params = [{transform_indices = @transform_0, window_bounds = array<i64: 1, 4, 128>}, {transform_indices = @transform_1, window_bounds = array<i64: 1, 1, 128>}, {transform_indices = @transform_2, window_bounds = array<i64: 1, 1, 1, 1>}, {transform_indices = @transform_3, window_bounds = array<i64: 1, 1, 4, 1>}, {transform_indices = @transform_4, window_bounds = array<i64: 1, 1, 4, 1>}, {transform_indices = @transform_5, window_bounds = array<i64: 1, 1, 4, 1>}]} {
    %c0_i32 = arith.constant 0 : i32
    %0 = arith.cmpi eq, %arg2, %c0_i32 : i32
    %1 = arith.extui %0 : i1 to i32
    %c0_i32_0 = arith.constant 0 : i32
    %2 = arith.cmpi ne, %1, %c0_i32_0 : i32
    scf.if %2 {
      %cst_45 = arith.constant 0.000000e+00 : f32
      %62 = vector.broadcast %cst_45 : f32 to vector<1x1xf32>
      %c0_46 = arith.constant 0 : index
      %c0_47 = arith.constant 0 : index
      %c0_48 = arith.constant 0 : index
      %c0_49 = arith.constant 0 : index
      %63 = vector.load %arg5[%c0_46, %c0_47, %c0_48, %c0_49] : memref<1x1x1x1xf32, #tpu.memory_space<vmem>>, vector<1x1x1x1xf32>
      %64 = vector.shape_cast %63 : vector<1x1x1x1xf32> to vector<1x1xf32>
      %65 = vector.shape_cast %62 : vector<1x1xf32> to vector<1x1x1x1xf32>
      tpu.vector_store %arg5[%c0_46, %c0_47, %c0_48, %c0_49], %65 {strides = array<i32>} : memref<1x1x1x1xf32, #tpu.memory_space<vmem>>, vector<1x1x1x1xf32>,
      %cst_50 = arith.constant 0.000000e+00 : f32
      %66 = vector.broadcast %cst_50 : f32 to vector<4x1xf32>
      %c0_51 = arith.constant 0 : index
      %c0_52 = arith.constant 0 : index
      %c0_53 = arith.constant 0 : index
      %c0_54 = arith.constant 0 : index
      %67 = vector.load %arg6[%c0_51, %c0_52, %c0_53, %c0_54] : memref<1x1x4x1xf32, #tpu.memory_space<vmem>>, vector<1x1x4x1xf32>
      %68 = vector.shape_cast %67 : vector<1x1x4x1xf32> to vector<4x1xf32>
      %69 = vector.shape_cast %66 : vector<4x1xf32> to vector<1x1x4x1xf32>
      tpu.vector_store %arg6[%c0_51, %c0_52, %c0_53, %c0_54], %69 {strides = array<i32>} : memref<1x1x4x1xf32, #tpu.memory_space<vmem>>, vector<1x1x4x1xf32>,
      %cst_55 = arith.constant 0.000000e+00 : f32
      %70 = vector.broadcast %cst_55 : f32 to vector<4x1xf32>
      %c0_56 = arith.constant 0 : index
      %c0_57 = arith.constant 0 : index
      %c0_58 = arith.constant 0 : index
      %c0_59 = arith.constant 0 : index
      %71 = vector.load %arg7[%c0_56, %c0_57, %c0_58, %c0_59] : memref<1x1x4x1xf32, #tpu.memory_space<vmem>>, vector<1x1x4x1xf32>
      %72 = vector.shape_cast %71 : vector<1x1x4x1xf32> to vector<4x1xf32>
      %73 = vector.shape_cast %70 : vector<4x1xf32> to vector<1x1x4x1xf32>
      tpu.vector_store %arg7[%c0_56, %c0_57, %c0_58, %c0_59], %73 {strides = array<i32>} : memref<1x1x4x1xf32, #tpu.memory_space<vmem>>, vector<1x1x4x1xf32>,
      %cst_60 = arith.constant 0.000000e+00 : f32
      %74 = vector.broadcast %cst_60 : f32 to vector<4x1xf32>
      %c0_61 = arith.constant 0 : index
      %c0_62 = arith.constant 0 : index
      %c0_63 = arith.constant 0 : index
      %c0_64 = arith.constant 0 : index
      %75 = vector.load %arg8[%c0_61, %c0_62, %c0_63, %c0_64] : memref<1x1x4x1xf32, #tpu.memory_space<vmem>>, vector<1x1x4x1xf32>
      %76 = vector.shape_cast %75 : vector<1x1x4x1xf32> to vector<4x1xf32>
      %77 = vector.shape_cast %74 : vector<4x1xf32> to vector<1x1x4x1xf32>
      tpu.vector_store %arg8[%c0_61, %c0_62, %c0_63, %c0_64], %77 {strides = array<i32>} : memref<1x1x4x1xf32, #tpu.memory_space<vmem>>, vector<1x1x4x1xf32>,
    } else {
    }
    %c0 = arith.constant 0 : index
    %c0_1 = arith.constant 0 : index
    %c0_2 = arith.constant 0 : index
    %3 = vector.load %arg3[%c0, %c0_1, %c0_2] : memref<1x4x128xf32, #tpu.memory_space<vmem>>, vector<1x4x128xf32>
    %4 = vector.shape_cast %3 : vector<1x4x128xf32> to vector<4x128xf32>
    %c0_3 = arith.constant 0 : index
    %c0_4 = arith.constant 0 : index
    %c0_5 = arith.constant 0 : index
    %5 = vector.load %arg4[%c0_3, %c0_4, %c0_5] : memref<1x1x128xi32, #tpu.memory_space<vmem>>, vector<1x1x128xi32>
    %6 = vector.shape_cast %5 : vector<1x1x128xi32> to vector<1x128xi32>
    %7 = tpu.iota {dimensions = array<i32: 0>} : vector<4x128xi32>
    %8 = vector.broadcast %6 : vector<1x128xi32> to vector<4x128xi32>
    %9 = arith.cmpi eq, %7, %8 : vector<4x128xi32>
    %10 = arith.extui %9 : vector<4x128xi1> to vector<4x128xi32>
    %11 = arith.sitofp %10 : vector<4x128xi32> to vector<4x128xf32>
    %cst = arith.constant dense<0xFF800000> : vector<128xf32>
    %12 = vector.multi_reduction <maximumf>, %4, %cst [0] : vector<4x128xf32> to vector<128xf32>
    %13 = vector.shape_cast %12 : vector<128xf32> to vector<1x128xf32>
    %14 = vector.broadcast %13 : vector<1x128xf32> to vector<4x128xf32>
    %15 = arith.subf %4, %14 : vector<4x128xf32>
    %16 = math.exp %15 : vector<4x128xf32>
    %cst_6 = arith.constant dense<0.000000e+00> : vector<128xf32>
    %17 = vector.multi_reduction <add>, %16, %cst_6 [0] : vector<4x128xf32> to vector<128xf32>
    %18 = vector.shape_cast %17 : vector<128xf32> to vector<1x128xf32>
    %19 = math.log %18 : vector<1x128xf32>
    %20 = arith.addf %13, %19 : vector<1x128xf32>
    %cst_7 = arith.constant 1.000000e+00 : f32
    %21 = vector.broadcast %cst_7 : f32 to vector<1x128xf32>
    %22 = arith.divf %21, %18 : vector<1x128xf32>
    %23 = vector.broadcast %22 : vector<1x128xf32> to vector<4x128xf32>
    %24 = arith.mulf %16, %23 : vector<4x128xf32>
    %25 = arith.mulf %11, %4 : vector<4x128xf32>
    %cst_8 = arith.constant dense<0.000000e+00> : vector<128xf32>
    %26 = vector.multi_reduction <add>, %25, %cst_8 [0] : vector<4x128xf32> to vector<128xf32>
    %27 = vector.shape_cast %26 : vector<128xf32> to vector<1x128xf32>
    %28 = arith.subf %20, %27 : vector<1x128xf32>
    %c0_9 = arith.constant 0 : index
    %c0_10 = arith.constant 0 : index
    %c0_11 = arith.constant 0 : index
    %c0_12 = arith.constant 0 : index
    %29 = vector.load %arg5[%c0_9, %c0_10, %c0_11, %c0_12] : memref<1x1x1x1xf32, #tpu.memory_space<vmem>>, vector<1x1x1x1xf32>
    %30 = vector.shape_cast %29 : vector<1x1x1x1xf32> to vector<1x1xf32>
    %cst_13 = arith.constant dense<0.000000e+00> : vector<1xf32>
    %31 = vector.multi_reduction <add>, %28, %cst_13 [1] : vector<1x128xf32> to vector<1xf32>
    %32 = vector.shape_cast %31 : vector<1xf32> to vector<1x1xf32>
    %33 = arith.addf %30, %32 : vector<1x1xf32>
    %c0_14 = arith.constant 0 : index
    %c0_15 = arith.constant 0 : index
    %c0_16 = arith.constant 0 : index
    %c0_17 = arith.constant 0 : index
    %34 = vector.load %arg5[%c0_14, %c0_15, %c0_16, %c0_17] : memref<1x1x1x1xf32, #tpu.memory_space<vmem>>, vector<1x1x1x1xf32>
    %35 = vector.shape_cast %34 : vector<1x1x1x1xf32> to vector<1x1xf32>
    %36 = vector.shape_cast %33 : vector<1x1xf32> to vector<1x1x1x1xf32>
    tpu.vector_store %arg5[%c0_14, %c0_15, %c0_16, %c0_17], %36 {strides = array<i32>} : memref<1x1x1x1xf32, #tpu.memory_space<vmem>>, vector<1x1x1x1xf32>,
    %c0_18 = arith.constant 0 : index
    %c0_19 = arith.constant 0 : index
    %c0_20 = arith.constant 0 : index
    %c0_21 = arith.constant 0 : index
    %37 = vector.load %arg6[%c0_18, %c0_19, %c0_20, %c0_21] : memref<1x1x4x1xf32, #tpu.memory_space<vmem>>, vector<1x1x4x1xf32>
    %38 = vector.shape_cast %37 : vector<1x1x4x1xf32> to vector<4x1xf32>
    %39 = arith.mulf %24, %11 : vector<4x128xf32>
    %cst_22 = arith.constant dense<0.000000e+00> : vector<4xf32>
    %40 = vector.multi_reduction <add>, %39, %cst_22 [1] : vector<4x128xf32> to vector<4xf32>
    %41 = vector.shape_cast %40 : vector<4xf32> to vector<4x1xf32>
    %42 = arith.addf %38, %41 : vector<4x1xf32>
    %c0_23 = arith.constant 0 : index
    %c0_24 = arith.constant 0 : index
    %c0_25 = arith.constant 0 : index
    %c0_26 = arith.constant 0 : index
    %43 = vector.load %arg6[%c0_23, %c0_24, %c0_25, %c0_26] : memref<1x1x4x1xf32, #tpu.memory_space<vmem>>, vector<1x1x4x1xf32>
    %44 = vector.shape_cast %43 : vector<1x1x4x1xf32> to vector<4x1xf32>
    %45 = vector.shape_cast %42 : vector<4x1xf32> to vector<1x1x4x1xf32>
    tpu.vector_store %arg6[%c0_23, %c0_24, %c0_25, %c0_26], %45 {strides = array<i32>} : memref<1x1x4x1xf32, #tpu.memory_space<vmem>>, vector<1x1x4x1xf32>,
    %c0_27 = arith.constant 0 : index
    %c0_28 = arith.constant 0 : index
    %c0_29 = arith.constant 0 : index
    %c0_30 = arith.constant 0 : index
    %46 = vector.load %arg7[%c0_27, %c0_28, %c0_29, %c0_30] : memref<1x1x4x1xf32, #tpu.memory_space<vmem>>, vector<1x1x4x1xf32>
    %47 = vector.shape_cast %46 : vector<1x1x4x1xf32> to vector<4x1xf32>
    %cst_31 = arith.constant dense<0.000000e+00> : vector<4xf32>
    %48 = vector.multi_reduction <add>, %24, %cst_31 [1] : vector<4x128xf32> to vector<4xf32>
    %49 = vector.shape_cast %48 : vector<4xf32> to vector<4x1xf32>
    %50 = arith.addf %47, %49 : vector<4x1xf32>
    %c0_32 = arith.constant 0 : index
    %c0_33 = arith.constant 0 : index
    %c0_34 = arith.constant 0 : index
    %c0_35 = arith.constant 0 : index
    %51 = vector.load %arg7[%c0_32, %c0_33, %c0_34, %c0_35] : memref<1x1x4x1xf32, #tpu.memory_space<vmem>>, vector<1x1x4x1xf32>
    %52 = vector.shape_cast %51 : vector<1x1x4x1xf32> to vector<4x1xf32>
    %53 = vector.shape_cast %50 : vector<4x1xf32> to vector<1x1x4x1xf32>
    tpu.vector_store %arg7[%c0_32, %c0_33, %c0_34, %c0_35], %53 {strides = array<i32>} : memref<1x1x4x1xf32, #tpu.memory_space<vmem>>, vector<1x1x4x1xf32>,
    %c0_36 = arith.constant 0 : index
    %c0_37 = arith.constant 0 : index
    %c0_38 = arith.constant 0 : index
    %c0_39 = arith.constant 0 : index
    %54 = vector.load %arg8[%c0_36, %c0_37, %c0_38, %c0_39] : memref<1x1x4x1xf32, #tpu.memory_space<vmem>>, vector<1x1x4x1xf32>
    %55 = vector.shape_cast %54 : vector<1x1x4x1xf32> to vector<4x1xf32>
    %cst_40 = arith.constant dense<0.000000e+00> : vector<4xf32>
    %56 = vector.multi_reduction <add>, %11, %cst_40 [1] : vector<4x128xf32> to vector<4xf32>
    %57 = vector.shape_cast %56 : vector<4xf32> to vector<4x1xf32>
    %58 = arith.addf %55, %57 : vector<4x1xf32>
    %c0_41 = arith.constant 0 : index
    %c0_42 = arith.constant 0 : index
    %c0_43 = arith.constant 0 : index
    %c0_44 = arith.constant 0 : index
    %59 = vector.load %arg8[%c0_41, %c0_42, %c0_43, %c0_44] : memref<1x1x4x1xf32, #tpu.memory_space<vmem>>, vector<1x1x4x1xf32>
    %60 = vector.shape_cast %59 : vector<1x1x4x1xf32> to vector<4x1xf32>
    %61 = vector.shape_cast %58 : vector<4x1xf32> to vector<1x1x4x1xf32>
    tpu.vector_store %arg8[%c0_41, %c0_42, %c0_43, %c0_44], %61 {strides = array<i32>} : memref<1x1x4x1xf32, #tpu.memory_space<vmem>>, vector<1x1x4x1xf32>,
    return
  }
  func.func @transform_0(%arg0: i32, %arg1: i32, %arg2: i32) -> (i32, i32, i32) {
    %c2_i32 = arith.constant 2 : i32
    %0 = arith.muli %arg1, %c2_i32 : i32
    %1 = arith.addi %0, %arg2 : i32
    %c1_i32 = arith.constant 1 : i32
    %2 = arith.minsi %1, %c1_i32 : i32
    %c0_i32 = arith.constant 0 : i32
    %c0_i32_0 = arith.constant 0 : i32
    return %arg0, %c0_i32, %2 : i32, i32, i32
  }
  func.func @transform_1(%arg0: i32, %arg1: i32, %arg2: i32) -> (i32, i32, i32) {
    %c2_i32 = arith.constant 2 : i32
    %0 = arith.muli %arg1, %c2_i32 : i32
    %1 = arith.addi %0, %arg2 : i32
    %c1_i32 = arith.constant 1 : i32
    %2 = arith.minsi %1, %c1_i32 : i32
    %c0_i32 = arith.constant 0 : i32
    %c0_i32_0 = arith.constant 0 : i32
    return %arg0, %c0_i32, %2 : i32, i32, i32
  }
  func.func @transform_2(%arg0: i32, %arg1: i32, %arg2: i32) -> (i32, i32, i32, i32) {
    %c0_i32 = arith.constant 0 : i32
    %c0_i32_0 = arith.constant 0 : i32
    %c0_i32_1 = arith.constant 0 : i32
    return %arg0, %arg1, %c0_i32, %c0_i32_0 : i32, i32, i32, i32
  }
  func.func @transform_3(%arg0: i32, %arg1: i32, %arg2: i32) -> (i32, i32, i32, i32) {
    %c0_i32 = arith.constant 0 : i32
    %c0_i32_0 = arith.constant 0 : i32
    %c0_i32_1 = arith.constant 0 : i32
    return %arg0, %arg1, %c0_i32, %c0_i32_0 : i32, i32, i32, i32
  }
  func.func @transform_4(%arg0: i32, %arg1: i32, %arg2: i32) -> (i32, i32, i32, i32) {
    %c0_i32 = arith.constant 0 : i32
    %c0_i32_0 = arith.constant 0 : i32
    %c0_i32_1 = arith.constant 0 : i32
    return %arg0, %arg1, %c0_i32, %c0_i32_0 : i32, i32, i32, i32
  }
  func.func @transform_5(%arg0: i32, %arg1: i32, %arg2: i32) -> (i32, i32, i32, i32) {
    %c0_i32 = arith.constant 0 : i32
    %c0_i32_0 = arith.constant 0 : i32
    %c0_i32_1 = arith.constant 0 : i32
    return %arg0, %arg1, %c0_i32, %c0_i32_0 : i32, i32, i32, i32
  }
}

</mosaic_0001>

<llo_original>
// kernel: tpu_custom_call.1
$region0: #{tpu_custom_call.1}
  #allocation0 [shape = 'u32[]', space=smem, size = 0x4, offset = 0x4, fixed_abs, tag = 'smem constant byte address 0x4 - core index']
  #allocation1 [shape = 'u32[144,128]{1,0:T(1,128)}', space=vmem, size = 0x12000, scoped, tag = 'internal scratch']
  %s0 = inlined_call_operand.hbm [shape: f32[2,4,256], index: 0, kind: input, shape index: {}]
  %s1 = inlined_call_operand.hbm [shape: s32[2,1,256], index: 1, kind: input, shape index: {}]
  %s2 = inlined_call_operand.vmem [shape: f32[2,1,1,1], index: 2, kind: output, shape index: {0}]
  %s3 = inlined_call_operand.vmem [shape: f32[2,1,4,1], index: 3, kind: output, shape index: {1}]
  %s4 = inlined_call_operand.vmem [shape: f32[2,1,4,1], index: 4, kind: output, shape index: {2}]
  %s5 = inlined_call_operand.vmem [shape: f32[2,1,4,1], index: 5, kind: output, shape index: {3}]
  %6 = xla_tuple %s2, %s3, %s4, %s5
  %s7 = sld [smem:[#allocation0]]
  $region77: #{tpu_custom_call.1} parent=0
    _
  %s9 = ssub.s32 1, %s7
  %s10 = scalar_select 0, %s9, %s7
  $region1: #{tpu_custom_call.1} parent=0
    #allocation2 [shape = 'u8[4096]{0}', space=vmem, size = 0x1000, scoped, tag = 'input window, operand 0']
    #allocation3 [shape = 's32[2]{0}', space=sflag, size = 0x8, scoped, tag = 'scoped memory for tpu_custom_call.1']
    #allocation4 [shape = 'u8[1024]{0}', space=vmem, size = 0x400, scoped, tag = 'input window, operand 1']
    #allocation5 [shape = 's32[2]{0}', space=sflag, size = 0x8, scoped, tag = 'scoped memory for tpu_custom_call.1']
    %11 = vsyncpa [#allocation3], 0
    %s12 = scalar_lea.sflag [#allocation3], 1
    %13 = vsyncpa %s12, 0
    %14 = vsyncpa [#allocation5], 0
    %s15 = scalar_lea.sflag [#allocation5], 1
    %16 = vsyncpa %s15, 0
    loop: start=0, step=1, limit=6
    $region2: #{tpu_custom_call.1} parent=1 // loop_pre_header
      _
    $region3: #{tpu_custom_call.1} parent=1 // loop_header
      %s18 = sphi 0, %s22
      %p19 = scmp.ge.s32.totalorder %s18, 6
      %s25 = sphi 0, %s44
      %s26 = sphi 0, %s40
      %s27 = sphi 0, %s36
      %s28 = sphi 0, %s25
      %s29 = sphi 0, %s26
      %s30 = sphi 0, %s27
      %s31 = sphi 0, %s28
      %s32 = sphi 0, %s29
      %s33 = sphi 0, %s30
      %s57 = sphi 0, %s59
      %s60 = sphi 0, %s57
      %s61 = sphi 0, %s60
      %s77 = sphi 0, %s61
      %s93 = sphi 0, %s95
      %s96 = sphi 0, %s93
      %s97 = sphi 0, %s96
      %s113 = sphi 0, %s97
      %s121 = sphi 0, %s123
      %s124 = sphi 0, %s121
      %s125 = sphi 0, %s124
      %s141 = sphi 0, %s125
      %s149 = sphi 0, %s151
      %s152 = sphi 0, %s149
      %s153 = sphi 0, %s152
      %s169 = sphi 0, %s153
      %s177 = sphi 0, %s179
      %s180 = sphi 0, %s177
      %s181 = sphi 0, %s180
      %s197 = sphi 0, %s181
      %s205 = sphi 0, %s207
      %s208 = sphi 0, %s205
      %s209 = sphi 0, %s208
      %s225 = sphi 0, %s209
    $region4: #{tpu_custom_call.1} parent=1 // loop_header_branch
      %21 = sbr.rel (%p19) target = $region8
    $region5: #{tpu_custom_call.1} parent=1 // loop_body
      %s23 = ssub.s32 %s18, 1
      %s24 = ssub.s32 %s18, 2
      %s34 = sadd.s32 1, %s27
      %p35 = scmp.ge.s32.totalorder %s34, 2
      %s36 = scalar_select %p35, 0, %s34
      %s37 = sadd.s32 1, %s26
      %s38 = scalar_select %p35, %s37, %s26
      %p39 = scmp.ge.s32.totalorder %s38, 1
      %s40 = scalar_select %p39, 0, %s38
      %s41 = sadd.s32 1, %s25
      %s42 = scalar_select %p39, %s41, %s25
      %p43 = scmp.ge.s32.totalorder %s42, 2
      %s44 = scalar_select %p43, 0, %s42
      %s45 = smul.u32 %s26, 2
      %s46 = sadd.s32 %s45, %s27
      %p47 = scmp.lt.s32.totalorder %s46, 1
      %s48 = scalar_select %p47, %s46, 1
      %s49 = smul.u32 %s40, 2
      %s50 = sadd.s32 %s49, %s36
      %p51 = scmp.lt.s32.totalorder %s50, 1
      %s52 = scalar_select %p51, %s50, 1
      %s53 = ssub.s32 %s25, %s44
      %s54 = ssub.s32 %s48, %s52
      %s55 = sor.u32 %s53, %s54
      %p56 = scmp.eq.s32.totalorder %s55, 0
      %s58 = sadd.s32 %s57, 1
      %s59 = scalar_select %p56, %s57, %s58
      %p62 = pneg %p56
      %p63 = scmp.eq.s32.totalorder %s18, 3
      %p64 = por %p62, %p63
      %p65 = scmp.ne.s32.totalorder %s57, %s60
      %p66 = scmp.eq.s32.totalorder %s18, 0
      %p67 = por %p65, %p66
      %p68 = scmp.ne.s32.totalorder %s57, %s60
      %p69 = scmp.eq.s32.totalorder %s23, 3
      %p70 = por %p68, %p69
      %p71 = scmp.ne.s32.totalorder %s60, %s61
      %p72 = scmp.eq.s32.totalorder %s23, 0
      %p73 = por %p71, %p72
      %p74 = scmp.ne.s32.totalorder %s60, %s61
      %p75 = scmp.eq.s32.totalorder %s24, 3
      %p76 = por %p74, %p75
      %p78 = scmp.ne.s32.totalorder %s61, %s77
      %p79 = scmp.eq.s32.totalorder %s24, 0
      %p80 = por %p78, %p79
      %s81 = smul.u32 %s26, 2
      %s82 = sadd.s32 %s81, %s27
      %p83 = scmp.lt.s32.totalorder %s82, 1
      %s84 = scalar_select %p83, %s82, 1
      %s85 = smul.u32 %s40, 2
      %s86 = sadd.s32 %s85, %s36
      %p87 = scmp.lt.s32.totalorder %s86, 1
      %s88 = scalar_select %p87, %s86, 1
      %s89 = ssub.s32 %s25, %s44
      %s90 = ssub.s32 %s84, %s88
      %s91 = sor.u32 %s89, %s90
      %p92 = scmp.eq.s32.totalorder %s91, 0
      %s94 = sadd.s32 %s93, 1
      %s95 = scalar_select %p92, %s93, %s94
      %p98 = pneg %p92
      %p99 = scmp.eq.s32.totalorder %s18, 3
      %p100 = por %p98, %p99
      %p101 = scmp.ne.s32.totalorder %s93, %s96
      %p102 = scmp.eq.s32.totalorder %s18, 0
      %p103 = por %p101, %p102
      %p104 = scmp.ne.s32.totalorder %s93, %s96
      %p105 = scmp.eq.s32.totalorder %s23, 3
      %p106 = por %p104, %p105
      %p107 = scmp.ne.s32.totalorder %s96, %s97
      %p108 = scmp.eq.s32.totalorder %s23, 0
      %p109 = por %p107, %p108
      %p110 = scmp.ne.s32.totalorder %s96, %s97
      %p111 = scmp.eq.s32.totalorder %s24, 3
      %p112 = por %p110, %p111
      %p114 = scmp.ne.s32.totalorder %s97, %s113
      %p115 = scmp.eq.s32.totalorder %s24, 0
      %p116 = por %p114, %p115
      %s117 = ssub.s32 %s25, %s44
      %s118 = ssub.s32 %s26, %s40
      %s119 = sor.u32 %s117, %s118
      %p120 = scmp.eq.s32.totalorder %s119, 0
      %s122 = sadd.s32 %s121, 1
      %s123 = scalar_select %p120, %s121, %s122
      %p126 = pneg %p120
      %p127 = scmp.eq.s32.totalorder %s18, 3
      %p128 = por %p126, %p127
      %p129 = scmp.ne.s32.totalorder %s121, %s124
      %p130 = scmp.eq.s32.totalorder %s18, 0
      %p131 = por %p129, %p130
      %p132 = scmp.ne.s32.totalorder %s121, %s124
      %p133 = scmp.eq.s32.totalorder %s23, 3
      %p134 = por %p132, %p133
      %p135 = scmp.ne.s32.totalorder %s124, %s125
      %p136 = scmp.eq.s32.totalorder %s23, 0
      %p137 = por %p135, %p136
      %p138 = scmp.ne.s32.totalorder %s124, %s125
      %p139 = scmp.eq.s32.totalorder %s24, 3
      %p140 = por %p138, %p139
      %p142 = scmp.ne.s32.totalorder %s125, %s141
      %p143 = scmp.eq.s32.totalorder %s24, 0
      %p144 = por %p142, %p143
      %s145 = ssub.s32 %s25, %s44
      %s146 = ssub.s32 %s26, %s40
      %s147 = sor.u32 %s145, %s146
      %p148 = scmp.eq.s32.totalorder %s147, 0
      %s150 = sadd.s32 %s149, 1
      %s151 = scalar_select %p148, %s149, %s150
      %p154 = pneg %p148
      %p155 = scmp.eq.s32.totalorder %s18, 3
      %p156 = por %p154, %p155
      %p157 = scmp.ne.s32.totalorder %s149, %s152
      %p158 = scmp.eq.s32.totalorder %s18, 0
      %p159 = por %p157, %p158
      %p160 = scmp.ne.s32.totalorder %s149, %s152
      %p161 = scmp.eq.s32.totalorder %s23, 3
      %p162 = por %p160, %p161
      %p163 = scmp.ne.s32.totalorder %s152, %s153
      %p164 = scmp.eq.s32.totalorder %s23, 0
      %p165 = por %p163, %p164
      %p166 = scmp.ne.s32.totalorder %s152, %s153
      %p167 = scmp.eq.s32.totalorder %s24, 3
      %p168 = por %p166, %p167
      %p170 = scmp.ne.s32.totalorder %s153, %s169
      %p171 = scmp.eq.s32.totalorder %s24, 0
      %p172 = por %p170, %p171
      %s173 = ssub.s32 %s25, %s44
      %s174 = ssub.s32 %s26, %s40
      %s175 = sor.u32 %s173, %s174
      %p176 = scmp.eq.s32.totalorder %s175, 0
      %s178 = sadd.s32 %s177, 1
      %s179 = scalar_select %p176, %s177, %s178
      %p182 = pneg %p176
      %p183 = scmp.eq.s32.totalorder %s18, 3
      %p184 = por %p182, %p183
      %p185 = scmp.ne.s32.totalorder %s177, %s180
      %p186 = scmp.eq.s32.totalorder %s18, 0
      %p187 = por %p185, %p186
      %p188 = scmp.ne.s32.totalorder %s177, %s180
      %p189 = scmp.eq.s32.totalorder %s23, 3
      %p190 = por %p188, %p189
      %p191 = scmp.ne.s32.totalorder %s180, %s181
      %p192 = scmp.eq.s32.totalorder %s23, 0
      %p193 = por %p191, %p192
      %p194 = scmp.ne.s32.totalorder %s180, %s181
      %p195 = scmp.eq.s32.totalorder %s24, 3
      %p196 = por %p194, %p195
      %p198 = scmp.ne.s32.totalorder %s181, %s197
      %p199 = scmp.eq.s32.totalorder %s24, 0
      %p200 = por %p198, %p199
      %s201 = ssub.s32 %s25, %s44
      %s202 = ssub.s32 %s26, %s40
      %s203 = sor.u32 %s201, %s202
      %p204 = scmp.eq.s32.totalorder %s203, 0
      %s206 = sadd.s32 %s205, 1
      %s207 = scalar_select %p204, %s205, %s206
      %p210 = pneg %p204
      %p211 = scmp.eq.s32.totalorder %s18, 3
      %p212 = por %p210, %p211
      %p213 = scmp.ne.s32.totalorder %s205, %s208
      %p214 = scmp.eq.s32.totalorder %s18, 0
      %p215 = por %p213, %p214
      %p216 = scmp.ne.s32.totalorder %s205, %s208
      %p217 = scmp.eq.s32.totalorder %s23, 3
      %p218 = por %p216, %p217
      %p219 = scmp.ne.s32.totalorder %s208, %s209
      %p220 = scmp.eq.s32.totalorder %s23, 0
      %p221 = por %p219, %p220
      %p222 = scmp.ne.s32.totalorder %s208, %s209
      %p223 = scmp.eq.s32.totalorder %s24, 3
      %p224 = por %p222, %p223
      %p226 = scmp.ne.s32.totalorder %s209, %s225
      %p227 = scmp.eq.s32.totalorder %s24, 0
      %p228 = por %p226, %p227
      %p229 = scmp.le.s32.totalorder 1, %s18
      %p230 = scmp.lt.s32.totalorder %s18, 5
      %p231 = pnand %p229, %p230
      %p232 = pneg %p231
      // Predicated region
      $region9: #{tpu_custom_call.1} parent=5 // pred_check
        _
      $region10: #{tpu_custom_call.1} parent=5 // pred_check_branch
        %234 = sbr.rel (%p231) target = $region12
      $region11: #{tpu_custom_call.1} parent=5 // pred_region
        %s235 = ssub.s32 %s18, 1
      $region12: #{tpu_custom_call.1} parent=5 // pred_fallthru
        _
      %p236 = scmp.lt.s32.totalorder %s18, 4
      // Predicated region
      $region13: #{tpu_custom_call.1} parent=5 // pred_check
        %p237 = pneg %p236
      $region14: #{tpu_custom_call.1} parent=5 // pred_check_branch
        %239 = sbr.rel (%p237) target = $region16
      $region15: #{tpu_custom_call.1} parent=5 // pred_region
        // Predicated region
        $region17: #{tpu_custom_call.1} parent=15 // pred_check
          %p240 = pneg %p67
        $region18: #{tpu_custom_call.1} parent=15 // pred_check_branch
          %242 = sbr.rel (%p240) target = $region20
        $region19: #{tpu_custom_call.1} parent=15 // pred_region
          %s243 = sand.u32 %s57, 1
          %s244 = scalar_lea.sflag [#allocation3], %s243
          %s245 = sand.u32 %s57, 1
          %s246 = smul.addr %s245, 4
          %s247 = scalar_lea.vmem [#allocation2], %s246
          %s248 = smul.u32 %s26, 2
          %s249 = sadd.s32 %s248, %s27
          %p250 = scmp.lt.s32.totalorder %s249, 1
          %s251 = scalar_select %p250, %s249, 1
          %s253 = ssub.s32 64, 64
          %254 = vsyncadd %s244, %s253
          %s255 = smul.addr %s25, 2
          %s256 = sadd.s32 %s251, %s255
          %s257 = smul.addr %s256, 64
          %s258 = scalar_lea.hbm %s0, %s257
          %s260 = sshll.u32 %s247, 4
          %s261 = int_to_ptr.vmem [resolvable:$true] %s260
          %263 = dma.hbm_to_vmem [thread:$0]  %s258, 64, %s261, %s244
        $region20: #{tpu_custom_call.1} parent=15 // pred_fallthru
          _
        // Predicated region
        $region21: #{tpu_custom_call.1} parent=15 // pred_check
          %p264 = pneg %p103
        $region22: #{tpu_custom_call.1} parent=15 // pred_check_branch
          %266 = sbr.rel (%p264) target = $region24
        $region23: #{tpu_custom_call.1} parent=15 // pred_region
          %s267 = sand.u32 %s93, 1
          %s268 = scalar_lea.sflag [#allocation5], %s267
          %s269 = sand.u32 %s93, 1
          %s270 = scalar_lea.vmem [#allocation4], %s269
          %s271 = smul.u32 %s26, 2
          %s272 = sadd.s32 %s271, %s27
          %p273 = scmp.lt.s32.totalorder %s272, 1
          %s274 = scalar_select %p273, %s272, 1
          %s276 = ssub.s32 16, 16
          %277 = vsyncadd %s268, %s276
          %s278 = smul.addr %s25, 2
          %s279 = sadd.s32 %s274, %s278
          %s280 = smul.addr %s279, 16
          %s281 = scalar_lea.hbm %s1, %s280
          %s283 = sshll.u32 %s270, 4
          %s284 = int_to_ptr.vmem [resolvable:$true] %s283
          %286 = dma.hbm_to_vmem [thread:$0]  %s281, 16, %s284, %s268
        $region24: #{tpu_custom_call.1} parent=15 // pred_fallthru
          _
      $region16: #{tpu_custom_call.1} parent=5 // pred_fallthru
        _
      %p287 = scmp.le.s32.totalorder 1, %s18
      %p288 = scmp.lt.s32.totalorder %s18, 5
      %p289 = pnand %p287, %p288
      %p290 = pneg %p289
      // Predicated region
      $region25: #{tpu_custom_call.1} parent=5 // pred_check
        _
      $region26: #{tpu_custom_call.1} parent=5 // pred_check_branch
        %292 = sbr.rel (%p289) target = $region28
      $region27: #{tpu_custom_call.1} parent=5 // pred_region
        %s293 = ssub.s32 %s18, 1
        %s294 = sand.u32 %s60, 1
        %s295 = scalar_lea.sflag [#allocation3], %s294
        %s296 = sand.u32 %s60, 1
        %s297 = smul.addr %s296, 4
        %s298 = scalar_lea.vmem [#allocation2], %s297
        // Predicated region
        $region29: #{tpu_custom_call.1} parent=27 // pred_check
          %p299 = pneg %p73
        $region30: #{tpu_custom_call.1} parent=27 // pred_check_branch
          %301 = sbr.rel (%p299) target = $region32
        $region31: #{tpu_custom_call.1} parent=27 // pred_region
          %302 = dma.done %s295, 64
        $region32: #{tpu_custom_call.1} parent=27 // pred_fallthru
          _
        %s303 = sand.u32 %s96, 1
        %s304 = scalar_lea.sflag [#allocation5], %s303
        %s305 = sand.u32 %s96, 1
        %s306 = scalar_lea.vmem [#allocation4], %s305
        // Predicated region
        $region33: #{tpu_custom_call.1} parent=27 // pred_check
          %p307 = pneg %p109
        $region34: #{tpu_custom_call.1} parent=27 // pred_check_branch
          %309 = sbr.rel (%p307) target = $region36
        $region35: #{tpu_custom_call.1} parent=27 // pred_region
          %310 = dma.done %s304, 16
        $region36: #{tpu_custom_call.1} parent=27 // pred_fallthru
          _
        %s311 = sand.u32 %s60, 1
        %s312 = scalar_lea.sflag [#allocation3], %s311
        %s313 = sand.u32 %s60, 1
        %s314 = smul.addr %s313, 4
        %s315 = scalar_lea.vmem [#allocation2], %s314
        %p316 = pneg %p73
        %p317 = pneg %p70
        %s318 = sand.u32 %s96, 1
        %s319 = scalar_lea.sflag [#allocation5], %s318
        %s320 = sand.u32 %s96, 1
        %s321 = scalar_lea.vmem [#allocation4], %s320
        %p322 = pneg %p109
        %p323 = pneg %p106
        %p324 = pneg %p137
        %p325 = pneg %p134
        %p326 = scmp.lt.s32.totalorder %s28, 1
        %s327 = scalar_select %p326, %s28, 1
        %p328 = scmp.lt.s32.totalorder %s29, 0
        %s329 = scalar_select %p328, %s29, 0
        %s330 = sadd.s32 %s329, %s327
        %s331 = scalar_lea.vmem %s2, %s330
        %p332 = pneg %p165
        %p333 = pneg %p162
        %p334 = scmp.lt.s32.totalorder %s28, 1
        %s335 = scalar_select %p334, %s28, 1
        %p336 = scmp.lt.s32.totalorder %s29, 0
        %s337 = scalar_select %p336, %s29, 0
        %s338 = sadd.s32 %s337, %s335
        %s339 = smul.addr %s338, 4
        %s340 = scalar_lea.vmem %s3, %s339
        %p341 = pneg %p193
        %p342 = pneg %p190
        %p343 = scmp.lt.s32.totalorder %s28, 1
        %s344 = scalar_select %p343, %s28, 1
        %p345 = scmp.lt.s32.totalorder %s29, 0
        %s346 = scalar_select %p345, %s29, 0
        %s347 = sadd.s32 %s346, %s344
        %s348 = smul.addr %s347, 4
        %s349 = scalar_lea.vmem %s4, %s348
        %p350 = pneg %p221
        %p351 = pneg %p218
        %p352 = scmp.lt.s32.totalorder %s28, 1
        %s353 = scalar_select %p352, %s28, 1
        %p354 = scmp.lt.s32.totalorder %s29, 0
        %s355 = scalar_select %p354, %s29, 0
        %s356 = sadd.s32 %s355, %s353
        %s357 = smul.addr %s356, 4
        %s358 = scalar_lea.vmem %s5, %s357
        %s359 = smul.u32 %s29, 2
        %s360 = sadd.s32 %s359, %s30
        %p361 = scmp.lt.s32.totalorder %s360, 1
        %s362 = scalar_select %p361, %s360, 1
        %s363 = smul.u32 %s29, 2
        %s364 = sadd.s32 %s363, %s30
        %p365 = scmp.lt.s32.totalorder %s364, 1
        %s366 = scalar_select %p365, %s364, 1
        %p367 = scmp.lt.s32.totalorder %s28, 1
        %s368 = scalar_select %p367, %s28, 1
        %p369 = scmp.lt.s32.totalorder %s29, 0
        %s370 = scalar_select %p369, %s29, 0
        %s371 = sadd.s32 %s370, %s368
        %s372 = scalar_lea.vmem %s2, %s371
        %p373 = scmp.lt.s32.totalorder %s28, 1
        %s374 = scalar_select %p373, %s28, 1
        %p375 = scmp.lt.s32.totalorder %s29, 0
        %s376 = scalar_select %p375, %s29, 0
        %s377 = sadd.s32 %s376, %s374
        %s378 = smul.addr %s377, 4
        %s379 = scalar_lea.vmem %s3, %s378
        %p380 = scmp.lt.s32.totalorder %s28, 1
        %s381 = scalar_select %p380, %s28, 1
        %p382 = scmp.lt.s32.totalorder %s29, 0
        %s383 = scalar_select %p382, %s29, 0
        %s384 = sadd.s32 %s383, %s381
        %s385 = smul.addr %s384, 4
        %s386 = scalar_lea.vmem %s4, %s385
        %p387 = scmp.lt.s32.totalorder %s28, 1
        %s388 = scalar_select %p387, %s28, 1
        %p389 = scmp.lt.s32.totalorder %s29, 0
        %s390 = scalar_select %p389, %s29, 0
        %s391 = sadd.s32 %s390, %s388
        %s392 = smul.addr %s391, 4
        %s393 = scalar_lea.vmem %s5, %s392
        %p394 = scmp.eq.s32.totalorder %s30, 0
        // Predicated region
        $region37: #{tpu_custom_call.1} parent=27 // pred_check
          %p395 = pneg %p394
        $region38: #{tpu_custom_call.1} parent=27 // pred_check_branch
          %397 = sbr.rel (%p395) target = $region40
        $region39: #{tpu_custom_call.1} parent=27 // pred_region
          %vm398 = vcmask 0
          %399 = vst.msk [vmem:[%s372] sm:$0x1] %vm398, 0.0
          %vm400 = vcmask 3072
          %401 = vst.msk [vmem:[%s379] sm:$0xf] %vm400, 0.0
          %402 = vst.msk [vmem:[%s386] sm:$0xf] %vm400, 0.0
          %403 = vst.msk [vmem:[%s393] sm:$0xf] %vm400, 0.0
        $region40: #{tpu_custom_call.1} parent=27 // pred_fallthru
          _
        %v404 = vld [vmem:[%s298] sm:$0xf]
        %v405 = vld [vmem:[%s306] sm:$0x1]
        %v406 = vlaneseq
        %v407 = vshrl.u32 %v406, 7
        %v408 = vlaneseq
        %v409 = vshrl.u32 %v408, 7
        %v410 = vsub.s32 0, %v409
        %v411 = vrot.slane %v405, %v410
        %vm412 = vcmp.eq.s32.totalorder %v407, %v411
        %v413 = vsel %vm412, 1, 0
        %v414 = vcvt.s32.f32 %v413
        %vm415 = vcmask 1043456
        %v416 = vsel %vm415, %v404, -inf
        %v417 = vrot.slane %v416, 4
        %v418 = vmax.f32 %v416, %v417
        %v419 = vrot.slane %v418, 2
        %v420 = vmax.f32 %v418, %v419
        %v421 = vrot.slane %v420, 1
        %v422 = vmax.f32 %v420, %v421
        %v423 = vsub.f32 %v404, %v422
        %v424 = vmul.f32 %v423, 1.442695
        %v425 = vpow.pop %v424
        %v426 = vsel %vm415, %v425, 0.0
        %v427 = vrot.slane %v426, 4
        %v428 = vadd.f32 %v426, %v427
        %v429 = vrot.slane %v428, 2
        %v430 = vadd.f32 %v428, %v429
        %v431 = vrot.slane %v430, 1
        %v432 = vadd.f32 %v430, %v431
        %v433 = vlog2.pop %v432
        %v434 = vmul.f32 %v433, 0.6931472
        %v435 = vadd.f32 %v422, %v434
        %v436 = vrcp.pop %v432
        %v437 = vmul.f32 1.0, %v436
        %v438 = vmul.f32 %v425, %v437
        %v439 = vmul.f32 %v414, %v404
        %v440 = vsel %vm415, %v439, 0.0
        %v441 = vrot.slane %v440, 4
        %v442 = vadd.f32 %v440, %v441
        %v443 = vrot.slane %v442, 2
        %v444 = vadd.f32 %v442, %v443
        %v445 = vrot.slane %v444, 1
        %v446 = vadd.f32 %v444, %v445
        %v447 = vsub.f32 %v435, %v446
        %v448 = vld [vmem:[%s372] sm:$0x1]
        %449 = vadd.xlane.f32.xlu0 %v447
        %v450 = vpop.xlane.xlu0 %449
        %v451 = vadd.f32 %v448, %v450
        %vm452 = vcmask 0
        %453 = vst.msk [vmem:[%s372] sm:$0x1] %vm452, %v451
        %v454 = vld [vmem:[%s379] sm:$0xf]
        %v455 = vmul.f32 %v438, %v414
        %v456 = vsel %vm415, %v455, 0.0
        %457 = vadd.xlane.f32.xlu0 %v456
        %v458 = vpop.xlane.xlu0 %457
        %v459 = vadd.f32 %v454, %v458
        %vm460 = vcmask 3072
        %461 = vst.msk [vmem:[%s379] sm:$0xf] %vm460, %v459
        %v462 = vld [vmem:[%s386] sm:$0xf]
        %v463 = vsel %vm415, %v438, 0.0
        %464 = vadd.xlane.f32.xlu0 %v463
        %v465 = vpop.xlane.xlu0 %464
        %v466 = vadd.f32 %v462, %v465
        %467 = vst.msk [vmem:[%s386] sm:$0xf] %vm460, %v466
        %v468 = vld [vmem:[%s393] sm:$0xf]
        %v469 = vsel %vm415, %v414, 0.0
        %470 = vadd.xlane.f32.xlu0 %v469
        %v471 = vpop.xlane.xlu0 %470
        %v472 = vadd.f32 %v468, %v471
        %473 = vst.msk [vmem:[%s393] sm:$0xf] %vm460, %v472
        %p474 = scmp.lt.s32.totalorder %s28, 1
        %s475 = scalar_select %p474, %s28, 1
        %p476 = scmp.lt.s32.totalorder %s29, 0
        %s477 = scalar_select %p476, %s29, 0
        %s478 = sadd.s32 %s477, %s475
        %s479 = scalar_lea.vmem %s2, %s478
        %p480 = scmp.lt.s32.totalorder %s28, 1
        %s481 = scalar_select %p480, %s28, 1
        %p482 = scmp.lt.s32.totalorder %s29, 0
        %s483 = scalar_select %p482, %s29, 0
        %s484 = sadd.s32 %s483, %s481
        %s485 = smul.addr %s484, 4
        %s486 = scalar_lea.vmem %s3, %s485
        %p487 = scmp.lt.s32.totalorder %s28, 1
        %s488 = scalar_select %p487, %s28, 1
        %p489 = scmp.lt.s32.totalorder %s29, 0
        %s490 = scalar_select %p489, %s29, 0
        %s491 = sadd.s32 %s490, %s488
        %s492 = smul.addr %s491, 4
        %s493 = scalar_lea.vmem %s4, %s492
        %p494 = scmp.lt.s32.totalorder %s28, 1
        %s495 = scalar_select %p494, %s28, 1
        %p496 = scmp.lt.s32.totalorder %s29, 0
        %s497 = scalar_select %p496, %s29, 0
        %s498 = sadd.s32 %s497, %s495
        %s499 = smul.addr %s498, 4
        %s500 = scalar_lea.vmem %s5, %s499
        // Predicated region
        $region41: #{tpu_custom_call.1} parent=27 // pred_check
          %p501 = pneg %p134
        $region42: #{tpu_custom_call.1} parent=27 // pred_check_branch
          %503 = sbr.rel (%p501) target = $region44
        $region43: #{tpu_custom_call.1} parent=27 // pred_region
          _
        $region44: #{tpu_custom_call.1} parent=27 // pred_fallthru
          _
        // Predicated region
        $region45: #{tpu_custom_call.1} parent=27 // pred_check
          %p504 = pneg %p162
        $region46: #{tpu_custom_call.1} parent=27 // pred_check_branch
          %506 = sbr.rel (%p504) target = $region48
        $region47: #{tpu_custom_call.1} parent=27 // pred_region
          _
        $region48: #{tpu_custom_call.1} parent=27 // pred_fallthru
          _
        // Predicated region
        $region49: #{tpu_custom_call.1} parent=27 // pred_check
          %p507 = pneg %p190
        $region50: #{tpu_custom_call.1} parent=27 // pred_check_branch
          %509 = sbr.rel (%p507) target = $region52
        $region51: #{tpu_custom_call.1} parent=27 // pred_region
          _
        $region52: #{tpu_custom_call.1} parent=27 // pred_fallthru
          _
        // Predicated region
        $region53: #{tpu_custom_call.1} parent=27 // pred_check
          %p510 = pneg %p218
        $region54: #{tpu_custom_call.1} parent=27 // pred_check_branch
          %512 = sbr.rel (%p510) target = $region56
        $region55: #{tpu_custom_call.1} parent=27 // pred_region
          _
        $region56: #{tpu_custom_call.1} parent=27 // pred_fallthru
          _
      $region28: #{tpu_custom_call.1} parent=5 // pred_fallthru
        _
      %p513 = scmp.le.s32.totalorder 2, %s18
      // Predicated region
      $region57: #{tpu_custom_call.1} parent=5 // pred_check
        %p514 = pneg %p513
      $region58: #{tpu_custom_call.1} parent=5 // pred_check_branch
        %516 = sbr.rel (%p514) target = $region60
      $region59: #{tpu_custom_call.1} parent=5 // pred_region
        %s517 = ssub.s32 %s18, 2
        // Predicated region
        $region61: #{tpu_custom_call.1} parent=59 // pred_check
          %p518 = pneg %p140
        $region62: #{tpu_custom_call.1} parent=59 // pred_check_branch
          %520 = sbr.rel (%p518) target = $region64
        $region63: #{tpu_custom_call.1} parent=59 // pred_region
          %p521 = scmp.lt.s32.totalorder %s31, 1
          %s522 = scalar_select %p521, %s31, 1
          %p523 = scmp.lt.s32.totalorder %s32, 0
          %s524 = scalar_select %p523, %s32, 0
          %s525 = sadd.s32 %s524, %s522
          %s526 = scalar_lea.vmem %s2, %s525
        $region64: #{tpu_custom_call.1} parent=59 // pred_fallthru
          _
        // Predicated region
        $region65: #{tpu_custom_call.1} parent=59 // pred_check
          %p527 = pneg %p168
        $region66: #{tpu_custom_call.1} parent=59 // pred_check_branch
          %529 = sbr.rel (%p527) target = $region68
        $region67: #{tpu_custom_call.1} parent=59 // pred_region
          %p530 = scmp.lt.s32.totalorder %s31, 1
          %s531 = scalar_select %p530, %s31, 1
          %p532 = scmp.lt.s32.totalorder %s32, 0
          %s533 = scalar_select %p532, %s32, 0
          %s534 = sadd.s32 %s533, %s531
          %s535 = smul.addr %s534, 4
          %s536 = scalar_lea.vmem %s3, %s535
        $region68: #{tpu_custom_call.1} parent=59 // pred_fallthru
          _
        // Predicated region
        $region69: #{tpu_custom_call.1} parent=59 // pred_check
          %p537 = pneg %p196
        $region70: #{tpu_custom_call.1} parent=59 // pred_check_branch
          %539 = sbr.rel (%p537) target = $region72
        $region71: #{tpu_custom_call.1} parent=59 // pred_region
          %p540 = scmp.lt.s32.totalorder %s31, 1
          %s541 = scalar_select %p540, %s31, 1
          %p542 = scmp.lt.s32.totalorder %s32, 0
          %s543 = scalar_select %p542, %s32, 0
          %s544 = sadd.s32 %s543, %s541
          %s545 = smul.addr %s544, 4
          %s546 = scalar_lea.vmem %s4, %s545
        $region72: #{tpu_custom_call.1} parent=59 // pred_fallthru
          _
        // Predicated region
        $region73: #{tpu_custom_call.1} parent=59 // pred_check
          %p547 = pneg %p224
        $region74: #{tpu_custom_call.1} parent=59 // pred_check_branch
          %549 = sbr.rel (%p547) target = $region76
        $region75: #{tpu_custom_call.1} parent=59 // pred_region
          %p550 = scmp.lt.s32.totalorder %s31, 1
          %s551 = scalar_select %p550, %s31, 1
          %p552 = scmp.lt.s32.totalorder %s32, 0
          %s553 = scalar_select %p552, %s32, 0
          %s554 = sadd.s32 %s553, %s551
          %s555 = smul.addr %s554, 4
          %s556 = scalar_lea.vmem %s5, %s555
        $region76: #{tpu_custom_call.1} parent=59 // pred_fallthru
          _
      $region60: #{tpu_custom_call.1} parent=5 // pred_fallthru
        _
    $region6: #{tpu_custom_call.1} parent=1 // loop_footer
      %s22 = sadd.s32 1, %s18
    $region7: #{tpu_custom_call.1} parent=1 // loop_footer_branch
      %17 = sbr.rel target = $region3
    $region8: #{tpu_custom_call.1} parent=1 // loop_exit
      _
    %557 = vsyncpa [#allocation3], 1
    %s558 = scalar_lea.sflag [#allocation3], 1
    %559 = vsyncpa %s558, 1
    %560 = vsyncpa [#allocation5], 1
    %s561 = scalar_lea.sflag [#allocation5], 1
    %562 = vsyncpa %s561, 1

</llo_original>
